<compile_context>
chip_gen: v5e
topology: v5e:2x2
jax: 0.10.0
libtpu: 0.0.40
codegen_flags: <defaults>
</compile_context>

<pallas_src>
import functools
import math

import jax
import jax.numpy as jnp
from jax.experimental import pallas as pl
from jax.experimental.pallas import tpu as pltpu
from jax.scipy.special import digamma as _jsp_digamma, gammaln as _jsp_gammaln

_HALF_LOG_2PI = 0.9189385332046727  # 0.5 * log(2*pi)


def _digamma(x):
    """digamma(x) for x >= 1: shift-by-4 recurrence + asymptotic series.

    3 EUP ops/element (log(y), 1/y, 1/p).  The recurrence term
    sum_{k=0..3} 1/(x+k) is evaluated as p'(x)/p(x) with p = x(x+1)(x+2)(x+3)
    (finite in f32 for x < ~4e9; p' ~ 4x^3 is finite to ~4e12).
    """
    y = x + 4.0
    inv_y = 1.0 / y
    inv_y2 = inv_y * inv_y
    p = x * (x + 1.0) * (x + 2.0) * (x + 3.0)
    dp = ((4.0 * x + 18.0) * x + 22.0) * x + 6.0        # p'(x)
    series = inv_y2 * (1.0 / 12.0 - inv_y2 * (1.0 / 120.0
             - inv_y2 * (1.0 / 252.0 - inv_y2 * (1.0 / 240.0))))
    return jnp.log(y) - 0.5 * inv_y - series - dp * (1.0 / p)


def _lgamma_digamma(x):
    """Fused (lgamma(x), digamma(x)) for x >= 1, sharing the EUP work.

    Shares y = x+4, log(y), 1/y and the single quartic shift product between the
    two functions: 4 EUP ops/element (log y, 1/y, 1/p, log p) instead of ~6 for
    the previous shift-by-6 two-cubic variant.  Extra series terms (VPU-only)
    keep f32 accuracy down to x = 1 (y = 5): truncation error < 1e-8.
    """
    y = x + 4.0
    log_y = jnp.log(y)
    inv_y = 1.0 / y
    inv_y2 = inv_y * inv_y
    p = x * (x + 1.0) * (x + 2.0) * (x + 3.0)
    inv_p = 1.0 / p
    log_p = jnp.log(p)
    dp = ((4.0 * x + 18.0) * x + 22.0) * x + 6.0
    lg = ((y - 0.5) * log_y - y + _HALF_LOG_2PI
          + inv_y * (1.0 / 12.0 - inv_y2 * (1.0 / 360.0
                     - inv_y2 * (1.0 / 1260.0 - inv_y2 * (1.0 / 1680.0))))
          - log_p)
    dg = (log_y - 0.5 * inv_y
          - inv_y2 * (1.0 / 12.0 - inv_y2 * (1.0 / 120.0
                      - inv_y2 * (1.0 / 252.0 - inv_y2 * (1.0 / 240.0))))
          - dp * inv_p)
    return lg, dg


def _dec_loss_kernel(ev_ref, tgt_ref, out_ref, *, loss_type, coef, batch,
                     partial_sum):
    """One batch tile.

    ev_ref:  (tile_b, C) natural-layout evidence block (native dtype).
    tgt_ref: (1, tile_b) int32 class ids (lane-dense).
    out_ref: (1, 128) per-tile partial sum if partial_sum, else (1, tile_b)
             per-sample losses.
    """
    tile_b, c = ev_ref.shape
    ragged = (batch % tile_b) != 0

    # In-kernel transpose to the sublane/lane-dense (C, tile_b) compute layout.
    # Cast to f32 first (32-bit relayouts are the best-supported path; v5e has
    # no bf16 VPU/EUP anyway).  The XLU is otherwise idle in this kernel.
    ev = ev_ref[...].astype(jnp.float32).T               # (C, TB)
    tgt = tgt_ref[...]                                    # (1, TB) int32

    valid = None
    if partial_sum and ragged:
        lane = jax.lax.broadcasted_iota(jnp.int32, (1, tile_b), 1)
        n_valid = batch - pl.program_id(0) * tile_b
        valid = lane < n_valid                            # (1, TB) bool
        # Zero padded columns so every downstream value stays finite before the
        # in-kernel partial sum (alpha == 1, kl_alpha == 1 on padded columns).
        ev = jnp.where(valid, ev, 0.0)

    ev = jnp.maximum(ev, 0.0)                             # relu(evidence)

    # In-kernel one-hot: class id on sublanes vs target id broadcast on lanes.
    class_id = jax.lax.broadcasted_iota(jnp.int32, (c, tile_b), 0)
    is_target = class_id == tgt                           # (C, TB) bool

    alpha = ev + 1.0
    strength = jnp.sum(alpha, axis=0, keepdims=True)      # (1, TB)

    if loss_type == "mse":
        t = is_target.astype(jnp.float32)
        p_hat = alpha * (1.0 / strength)
        err = jnp.sum((t - p_hat) ** 2, axis=0, keepdims=True)
        var_num = jnp.sum(alpha * (strength - alpha), axis=0, keepdims=True)
        loss_dir = err + var_num / (strength * strength * (strength + 1.0))
    else:
        # Gather the target-class alpha so transcendentals only touch (1, TB).
        alpha_t = jnp.sum(jnp.where(is_target, alpha, 0.0), axis=0, keepdims=True)
        if loss_type == "log":
            loss_dir = jnp.log(strength) - jnp.log(alpha_t)
        else:  # "digamma"
            loss_dir = _digamma(strength) - _digamma(alpha_t)

    if coef != 0.0:
        # KL(Dir(kl_alpha) || Dir(1)); kl_alpha >= 1 everywhere.
        kl_alpha = jnp.where(is_target, 1.0, alpha)        # == (alpha-1)*(1-t)+1
        sum_kl = jnp.sum(kl_alpha, axis=0, keepdims=True)
        lg_kl, dg_kl = _lgamma_digamma(kl_alpha)
        lg_s, dg_s = _lgamma_digamma(sum_kl)
        # lgamma(ones).sum() == 0; lgamma(ones.sum()) == lgamma(C) (static).
        first = lg_s - jnp.sum(lg_kl, axis=0, keepdims=True) - math.lgamma(float(c))
        second = jnp.sum((kl_alpha - 1.0) * (dg_kl - dg_s), axis=0, keepdims=True)
        loss = loss_dir + coef * (first + second)
    else:
        loss = loss_dir

    if partial_sum:
        if ragged:
            loss = jnp.where(valid, loss, 0.0)             # drop padded columns
        part = jnp.sum(loss, axis=1, keepdims=True)        # (1, 1)
        out_ref[...] = jnp.broadcast_to(part, (1, 128))    # lane-dense store
    else:
        out_ref[...] = loss                                 # (1, TB) per-sample


def _tpu_vmem_capacity_bytes():
    """Generation-aware VMEM capacity (64 MiB v7x, 128 MiB v5e/v6e)."""
    try:
        info = pltpu.get_tpu_info()
        cap = int(getattr(info, "vmem_capacity_bytes", 0))
        if cap > 0:
            return cap
    except Exception:
        pass
    return 64 * 1024 * 1024   # conservative fallback (v7x physical VMEM)


def _pick_tile_b(batch, num_classes, itemsize, kl_enabled):
    """Batch tile size (sublane dim of the input block, lane dim of compute).

    Sized from the real VMEM capacity, accounting for (a) the 128-lane padding
    of the double-buffered (tile_b, C) input blocks, (b) the f32 pre-transpose
    copy and (c) the live (C, tile_b) / (1, tile_b) f32 working set of the KL
    path.  Capped so large batches keep >= 2 (preferably >= 4) grid steps for
    megacore sharding and pipeline overlap.
    """
    if batch <= 256:
        return int(batch)
    cap = _tpu_vmem_capacity_bytes()
    budget = int(cap * 0.45)
    c_lane = ((num_classes + 127) // 128) * 128   # lane padding of (TB, C) buffers
    c_sub = ((num_classes + 7) // 8) * 8          # sublane padding of (C, TB) temps
    n_ct = 8 if kl_enabled else 5                 # live (C, TB) f32 temporaries
    n_row = 6                                     # live (1, TB) f32/int32 rows
    bytes_per_row = (c_lane * (2 * itemsize + 4)  # 2x input buffers + f32 copy
                     + c_sub * 4 * n_ct
                     + 8 * 4 * n_row)
    tile = (budget // max(1, bytes_per_row)) // 128 * 128
    if batch >= 4 * 1024:
        tile = min(tile, max(1024, (batch // 4) // 128 * 128))
    else:
        tile = min(tile, max(128, (batch // 2) // 128 * 128))
    tile = max(128, tile)
    if tile >= batch:
        return int(batch)
    return int(tile)


def dec_loss(evidence, targets, *, loss_type="log", reduction="mean",
             reg_weight=None, annealing_step=None, current_epoch=None,
             tile_b=None):
    """JAX/Pallas equivalent of DECLoss.forward (targets must be 1-D class ids)."""
    if reg_weight is not None and reg_weight < 0:
        raise ValueError(
            f"The regularization weight should be non-negative, but got {reg_weight}.")
    if annealing_step is not None and annealing_step <= 0:
        raise ValueError(
            f"The annealing step should be positive, but got {annealing_step}.")
    if reduction not in ("none", "mean", "sum") and reduction is not None:
        raise ValueError(f"{reduction} is not a valid value for reduction.")
    if loss_type not in ("mse", "log", "digamma"):
        raise ValueError(f"{loss_type} is not a valid value for mse/log/digamma loss.")
    if targets.ndim != 1:
        # TODO(synk): mixup/cutmix (2-D soft targets) path, like the original module.
        raise NotImplementedError("DECLoss does not yet support mixup/cutmix.")
    if evidence.ndim != 2:
        raise ValueError("evidence must be a (batch, num_classes) array.")
    if annealing_step is not None and current_epoch is None:
        raise ValueError("current_epoch is required when annealing_step is set.")

    b, c = evidence.shape

    # Trace-time annealing coefficient (static Python float -> KL block is
    # compiled out entirely when it is exactly 0).
    if reg_weight is None and annealing_step is None:
        coef = 0.0
    elif annealing_step is None:
        coef = float(reg_weight)
    else:
        coef = min(1.0, float(current_epoch) / float(annealing_step))
    kl_enabled = coef != 0.0

    itemsize = jnp.dtype(evidence.dtype).itemsize
    if tile_b is None:
        tile_b = _pick_tile_b(b, c, itemsize, kl_enabled)
    else:
        tile_b = int(tile_b)
        if tile_b >= b:
            tile_b = b
        elif tile_b % 128 != 0:
            raise ValueError("tile_b must be a multiple of 128 (or >= batch).")
    n_tiles = pl.cdiv(b, tile_b)

    # Targets: free reshape of the 1-D id vector to a lane-dense (1, B) row.
    tgt_row = targets.astype(jnp.int32).reshape(1, b)

    partial_sum = reduction in ("mean", "sum")
    kernel = functools.partial(_dec_loss_kernel, loss_type=loss_type, coef=coef,
                               batch=b, partial_sum=partial_sum)

    if partial_sum:
        out_shape = jax.ShapeDtypeStruct((1, n_tiles * 128), jnp.float32)
        out_spec = pl.BlockSpec((1, 128), lambda i: (0, i))
    else:
        out_shape = jax.ShapeDtypeStruct((1, b), jnp.float32)
        out_spec = pl.BlockSpec((1, tile_b), lambda i: (0, i))

    cap = _tpu_vmem_capacity_bytes()
    vmem_limit = max(32 * 1024 * 1024, min(int(cap * 0.75), 112 * 1024 * 1024))

    out = pl.pallas_call(
        kernel,
        out_shape=out_shape,
        grid=(n_tiles,),
        in_specs=[
            pl.BlockSpec((tile_b, c), lambda i: (i, 0)),   # evidence, natural (B, C)
            pl.BlockSpec((1, tile_b), lambda i: (0, i)),   # targets, (1, B) int32
        ],
        out_specs=out_spec,
        compiler_params=pltpu.CompilerParams(
            dimension_semantics=("parallel",),
            vmem_limit_bytes=vmem_limit),
    )(evidence, tgt_row)

    if reduction == "mean":
        return jnp.sum(out.reshape(n_tiles, 128)[:, 0]) / b
    if reduction == "sum":
        return jnp.sum(out.reshape(n_tiles, 128)[:, 0])
    return out.reshape(b, 1)   # 'none' / None: matches torch's (B, 1)


def _reference_per_sample(evidence, targets, *, loss_type, coef):
    """Pure-JAX reference (jax.scipy.special), mirrors the PyTorch math; (B, 1)."""
    c = evidence.shape[-1]
    t = jax.nn.one_hot(targets, c, dtype=jnp.float32)
    ev = jnp.maximum(evidence.astype(jnp.float32), 0.0)
    alpha = ev + 1.0
    strength = jnp.sum(alpha, axis=1, keepdims=True)
    if loss_type == "mse":
        ld = (jnp.sum((t - alpha / strength) ** 2, 1, keepdims=True)
              + jnp.sum(alpha * (strength - alpha)
                        / (strength * strength * (strength + 1.0)), 1, keepdims=True))
    elif loss_type == "log":
        ld = jnp.sum(t * (jnp.log(strength) - jnp.log(alpha)), 1, keepdims=True)
    else:
        ld = jnp.sum(t * (_jsp_digamma(strength) - _jsp_digamma(alpha)), 1,
                     keepdims=True)
    kl_alpha = (alpha - 1.0) * (1.0 - t) + 1.0
    skl = jnp.sum(kl_alpha, 1, keepdims=True)
    first = (_jsp_gammaln(skl) - jnp.sum(_jsp_gammaln(kl_alpha), 1, keepdims=True)
             - _jsp_gammaln(jnp.float32(c)))
    second = jnp.sum((kl_alpha - 1.0) * (_jsp_digamma(kl_alpha) - _jsp_digamma(skl)),
                     1, keepdims=True)
    return ld + coef * (first + second)


if __name__ == "__main__":
    key = jax.random.PRNGKey(0)
    B, C = 8, 10
    k1, k2, k3, k4 = jax.random.split(key, 4)
    evidence = jax.random.normal(k1, (B, C), dtype=jnp.float32) * 2.0
    targets = jax.random.randint(k2, (B,), 0, C)

    # All loss types with a fixed regularization weight (coef = 0.5).
    for lt in ("log", "mse", "digamma"):
        out = jax.block_until_ready(
            dec_loss(evidence, targets, loss_type=lt, reduction="mean",
                     reg_weight=0.5))
        ref = jnp.mean(_reference_per_sample(evidence, targets, loss_type=lt, coef=0.5))
        assert jnp.allclose(out, ref, atol=1e-4, rtol=1e-4), (lt, out, ref)

    # Default config (reg_weight=None, annealing_step=None): coef == 0, KL skipped.
    out0 = jax.block_until_ready(dec_loss(evidence, targets))
    ref0 = jnp.mean(_reference_per_sample(evidence, targets, loss_type="log", coef=0.0))
    assert jnp.allclose(out0, ref0, atol=1e-4, rtol=1e-4), (out0, ref0)

    # Annealed coefficient + 'sum' reduction.
    outs = jax.block_until_ready(
        dec_loss(evidence, targets, loss_type="log", reduction="sum",
                 annealing_step=10, current_epoch=4))
    refs = jnp.sum(_reference_per_sample(evidence, targets, loss_type="log", coef=0.4))
    assert jnp.allclose(outs, refs, atol=1e-4, rtol=1e-4), (outs, refs)

    # 'none' reduction returns per-sample losses shaped (B, 1).
    outn = jax.block_until_ready(
        dec_loss(evidence, targets, loss_type="mse", reduction="none",
                 reg_weight=0.25))
    refn = _reference_per_sample(evidence, targets, loss_type="mse", coef=0.25)
    assert outn.shape == (B, 1)
    assert jnp.allclose(outn, refn, atol=1e-4, rtol=1e-4), (outn, refn)

    # Multi-tile grid path (ragged last tile, in-kernel partial sums, masking)
    # with bf16 evidence.
    B2 = 300
    ev2 = (jax.random.normal(k3, (B2, C), dtype=jnp.float32) * 2.0).astype(jnp.bfloat16)
    tg2 = jax.random.randint(k4, (B2,), 0, C)
    out2 = jax.block_until_ready(
        dec_loss(ev2, tg2, loss_type="digamma", reduction="mean",
                 reg_weight=1.0, tile_b=128))
    ref2 = jnp.mean(_reference_per_sample(ev2.astype(jnp.float32), tg2,
                                          loss_type="digamma", coef=1.0))
    assert jnp.allclose(out2, ref2, atol=1e-3, rtol=1e-3), (out2, ref2)

    # Same multi-tile path with the automatic tile heuristic + KL disabled.
    out3 = jax.block_until_ready(
        dec_loss(ev2, tg2, loss_type="log", reduction="mean"))
    ref3 = jnp.mean(_reference_per_sample(ev2.astype(jnp.float32), tg2,
                                          loss_type="log", coef=0.0))
    assert jnp.allclose(out3, ref3, atol=1e-3, rtol=1e-3), (out3, ref3)

    print("KERNEL_OK")
</pallas_src>

<mosaic_0001>
module attributes {stable_mosaic.version = 11 : i64} {
  func.func @_dec_loss_kernel(%arg0: i32, %arg1: memref<8x10xf32, #tpu.memory_space<vmem>>, %arg2: memref<1x8xi32, #tpu.memory_space<vmem>>, %arg3: memref<1x128xf32, #tpu.memory_space<vmem>>) attributes {dimension_semantics = [#tpu.dimension_semantics<parallel>], iteration_bounds = array<i64: 1>, scalar_prefetch = 0 : i64, scratch_operands = 0 : i64, tpu.core_type = #tpu.core_type<tc>, window_params = [{transform_indices = @transform_0, window_bounds = array<i64: 8, 10>}, {transform_indices = @transform_1, window_bounds = array<i64: 1, 8>}, {transform_indices = @transform_2, window_bounds = array<i64: 1, 128>}]} {
    %c0 = arith.constant 0 : index
    %c0_0 = arith.constant 0 : index
    %0 = vector.load %arg1[%c0, %c0_0] : memref<8x10xf32, #tpu.memory_space<vmem>>, vector<8x10xf32>
    %1 = tpu.transpose %0, [1, 0] : vector<8x10xf32> -> vector<10x8xf32>
    %c0_1 = arith.constant 0 : index
    %c0_2 = arith.constant 0 : index
    %2 = vector.load %arg2[%c0_1, %c0_2] : memref<1x8xi32, #tpu.memory_space<vmem>>, vector<1x8xi32>
    %cst = arith.constant 0.000000e+00 : f32
    %3 = vector.broadcast %cst : f32 to vector<10x8xf32>
    %4 = arith.maximumf %1, %3 : vector<10x8xf32>
    %5 = tpu.iota {dimensions = array<i32: 0>} : vector<10x8xi32>
    %6 = vector.broadcast %2 : vector<1x8xi32> to vector<10x8xi32>
    %7 = arith.cmpi eq, %5, %6 : vector<10x8xi32>
    %cst_3 = arith.constant 1.000000e+00 : f32
    %8 = vector.broadcast %cst_3 : f32 to vector<10x8xf32>
    %9 = arith.addf %4, %8 : vector<10x8xf32>
    %cst_4 = arith.constant dense<0.000000e+00> : vector<8xf32>
    %10 = vector.multi_reduction <add>, %9, %cst_4 [0] : vector<10x8xf32> to vector<8xf32>
    %11 = vector.shape_cast %10 : vector<8xf32> to vector<1x8xf32>
    %cst_5 = arith.constant 0.000000e+00 : f32
    %12 = vector.broadcast %cst_5 : f32 to vector<10x8xf32>
    %13 = arith.select %7, %9, %12 : vector<10x8xi1>, vector<10x8xf32>
    %cst_6 = arith.constant dense<0.000000e+00> : vector<8xf32>
    %14 = vector.multi_reduction <add>, %13, %cst_6 [0] : vector<10x8xf32> to vector<8xf32>
    %15 = vector.shape_cast %14 : vector<8xf32> to vector<1x8xf32>
    %16 = math.log %11 : vector<1x8xf32>
    %17 = math.log %15 : vector<1x8xf32>
    %18 = arith.subf %16, %17 : vector<1x8xf32>
    %cst_7 = arith.constant 1.000000e+00 : f32
    %19 = vector.broadcast %cst_7 : f32 to vector<10x8xf32>
    %20 = arith.select %7, %19, %9 : vector<10x8xi1>, vector<10x8xf32>
    %cst_8 = arith.constant dense<0.000000e+00> : vector<8xf32>
    %21 = vector.multi_reduction <add>, %20, %cst_8 [0] : vector<10x8xf32> to vector<8xf32>
    %22 = vector.shape_cast %21 : vector<8xf32> to vector<1x8xf32>
    %cst_9 = arith.constant 4.000000e+00 : f32
    %23 = vector.broadcast %cst_9 : f32 to vector<10x8xf32>
    %24 = arith.addf %20, %23 : vector<10x8xf32>
    %25 = math.log %24 : vector<10x8xf32>
    %cst_10 = arith.constant 1.000000e+00 : f32
    %26 = vector.broadcast %cst_10 : f32 to vector<10x8xf32>
    %27 = arith.divf %26, %24 : vector<10x8xf32>
    %28 = arith.mulf %27, %27 : vector<10x8xf32>
    %cst_11 = arith.constant 1.000000e+00 : f32
    %29 = vector.broadcast %cst_11 : f32 to vector<10x8xf32>
    %30 = arith.addf %20, %29 : vector<10x8xf32>
    %31 = arith.mulf %20, %30 : vector<10x8xf32>
    %cst_12 = arith.constant 2.000000e+00 : f32
    %32 = vector.broadcast %cst_12 : f32 to vector<10x8xf32>
    %33 = arith.addf %20, %32 : vector<10x8xf32>
    %34 = arith.mulf %31, %33 : vector<10x8xf32>
    %cst_13 = arith.constant 3.000000e+00 : f32
    %35 = vector.broadcast %cst_13 : f32 to vector<10x8xf32>
    %36 = arith.addf %20, %35 : vector<10x8xf32>
    %37 = arith.mulf %34, %36 : vector<10x8xf32>
    %cst_14 = arith.constant 1.000000e+00 : f32
    %38 = vector.broadcast %cst_14 : f32 to vector<10x8xf32>
    %39 = arith.divf %38, %37 : vector<10x8xf32>
    %40 = math.log %37 : vector<10x8xf32>
    %cst_15 = arith.constant 4.000000e+00 : f32
    %41 = vector.broadcast %cst_15 : f32 to vector<10x8xf32>
    %42 = arith.mulf %41, %20 : vector<10x8xf32>
    %cst_16 = arith.constant 1.800000e+01 : f32
    %43 = vector.broadcast %cst_16 : f32 to vector<10x8xf32>
    %44 = arith.addf %42, %43 : vector<10x8xf32>
    %45 = arith.mulf %44, %20 : vector<10x8xf32>
    %cst_17 = arith.constant 2.200000e+01 : f32
    %46 = vector.broadcast %cst_17 : f32 to vector<10x8xf32>
    %47 = arith.addf %45, %46 : vector<10x8xf32>
    %48 = arith.mulf %47, %20 : vector<10x8xf32>
    %cst_18 = arith.constant 6.000000e+00 : f32
    %49 = vector.broadcast %cst_18 : f32 to vector<10x8xf32>
    %50 = arith.addf %48, %49 : vector<10x8xf32>
    %cst_19 = arith.constant 5.000000e-01 : f32
    %51 = vector.broadcast %cst_19 : f32 to vector<10x8xf32>
    %52 = arith.subf %24, %51 : vector<10x8xf32>
    %53 = arith.mulf %52, %25 : vector<10x8xf32>
    %54 = arith.subf %53, %24 : vector<10x8xf32>
    %cst_20 = arith.constant 0.918938517 : f32
    %55 = vector.broadcast %cst_20 : f32 to vector<10x8xf32>
    %56 = arith.addf %54, %55 : vector<10x8xf32>
    %cst_21 = arith.constant 5.95238118E-4 : f32
    %57 = vector.broadcast %cst_21 : f32 to vector<10x8xf32>
    %58 = arith.mulf %28, %57 : vector<10x8xf32>
    %cst_22 = arith.constant 7.93650805E-4 : f32
    %59 = vector.broadcast %cst_22 : f32 to vector<10x8xf32>
    %60 = arith.subf %59, %58 : vector<10x8xf32>
    %61 = arith.mulf %28, %60 : vector<10x8xf32>
    %cst_23 = arith.constant 0.00277777785 : f32
    %62 = vector.broadcast %cst_23 : f32 to vector<10x8xf32>
    %63 = arith.subf %62, %61 : vector<10x8xf32>
    %64 = arith.mulf %28, %63 : vector<10x8xf32>
    %cst_24 = arith.constant 0.0833333358 : f32
    %65 = vector.broadcast %cst_24 : f32 to vector<10x8xf32>
    %66 = arith.subf %65, %64 : vector<10x8xf32>
    %67 = arith.mulf %27, %66 : vector<10x8xf32>
    %68 = arith.addf %56, %67 : vector<10x8xf32>
    %69 = arith.subf %68, %40 : vector<10x8xf32>
    %cst_25 = arith.constant 5.000000e-01 : f32
    %70 = vector.broadcast %cst_25 : f32 to vector<10x8xf32>
    %71 = arith.mulf %70, %27 : vector<10x8xf32>
    %72 = arith.subf %25, %71 : vector<10x8xf32>
    %cst_26 = arith.constant 0.00416666688 : f32
    %73 = vector.broadcast %cst_26 : f32 to vector<10x8xf32>
    %74 = arith.mulf %28, %73 : vector<10x8xf32>
    %cst_27 = arith.constant 0.0039682542 : f32
    %75 = vector.broadcast %cst_27 : f32 to vector<10x8xf32>
    %76 = arith.subf %75, %74 : vector<10x8xf32>
    %77 = arith.mulf %28, %76 : vector<10x8xf32>
    %cst_28 = arith.constant 0.00833333377 : f32
    %78 = vector.broadcast %cst_28 : f32 to vector<10x8xf32>
    %79 = arith.subf %78, %77 : vector<10x8xf32>
    %80 = arith.mulf %28, %79 : vector<10x8xf32>
    %cst_29 = arith.constant 0.0833333358 : f32
    %81 = vector.broadcast %cst_29 : f32 to vector<10x8xf32>
    %82 = arith.subf %81, %80 : vector<10x8xf32>
    %83 = arith.mulf %28, %82 : vector<10x8xf32>
    %84 = arith.subf %72, %83 : vector<10x8xf32>
    %85 = arith.mulf %50, %39 : vector<10x8xf32>
    %86 = arith.subf %84, %85 : vector<10x8xf32>
    %cst_30 = arith.constant 4.000000e+00 : f32
    %87 = vector.broadcast %cst_30 : f32 to vector<1x8xf32>
    %88 = arith.addf %22, %87 : vector<1x8xf32>
    %89 = math.log %88 : vector<1x8xf32>
    %cst_31 = arith.constant 1.000000e+00 : f32
    %90 = vector.broadcast %cst_31 : f32 to vector<1x8xf32>
    %91 = arith.divf %90, %88 : vector<1x8xf32>
    %92 = arith.mulf %91, %91 : vector<1x8xf32>
    %cst_32 = arith.constant 1.000000e+00 : f32
    %93 = vector.broadcast %cst_32 : f32 to vector<1x8xf32>
    %94 = arith.addf %22, %93 : vector<1x8xf32>
    %95 = arith.mulf %22, %94 : vector<1x8xf32>
    %cst_33 = arith.constant 2.000000e+00 : f32
    %96 = vector.broadcast %cst_33 : f32 to vector<1x8xf32>
    %97 = arith.addf %22, %96 : vector<1x8xf32>
    %98 = arith.mulf %95, %97 : vector<1x8xf32>
    %cst_34 = arith.constant 3.000000e+00 : f32
    %99 = vector.broadcast %cst_34 : f32 to vector<1x8xf32>
    %100 = arith.addf %22, %99 : vector<1x8xf32>
    %101 = arith.mulf %98, %100 : vector<1x8xf32>
    %cst_35 = arith.constant 1.000000e+00 : f32
    %102 = vector.broadcast %cst_35 : f32 to vector<1x8xf32>
    %103 = arith.divf %102, %101 : vector<1x8xf32>
    %104 = math.log %101 : vector<1x8xf32>
    %cst_36 = arith.constant 4.000000e+00 : f32
    %105 = vector.broadcast %cst_36 : f32 to vector<1x8xf32>
    %106 = arith.mulf %105, %22 : vector<1x8xf32>
    %cst_37 = arith.constant 1.800000e+01 : f32
    %107 = vector.broadcast %cst_37 : f32 to vector<1x8xf32>
    %108 = arith.addf %106, %107 : vector<1x8xf32>
    %109 = arith.mulf %108, %22 : vector<1x8xf32>
    %cst_38 = arith.constant 2.200000e+01 : f32
    %110 = vector.broadcast %cst_38 : f32 to vector<1x8xf32>
    %111 = arith.addf %109, %110 : vector<1x8xf32>
    %112 = arith.mulf %111, %22 : vector<1x8xf32>
    %cst_39 = arith.constant 6.000000e+00 : f32
    %113 = vector.broadcast %cst_39 : f32 to vector<1x8xf32>
    %114 = arith.addf %112, %113 : vector<1x8xf32>
    %cst_40 = arith.constant 5.000000e-01 : f32
    %115 = vector.broadcast %cst_40 : f32 to vector<1x8xf32>
    %116 = arith.subf %88, %115 : vector<1x8xf32>
    %117 = arith.mulf %116, %89 : vector<1x8xf32>
    %118 = arith.subf %117, %88 : vector<1x8xf32>
    %cst_41 = arith.constant 0.918938517 : f32
    %119 = vector.broadcast %cst_41 : f32 to vector<1x8xf32>
    %120 = arith.addf %118, %119 : vector<1x8xf32>
    %cst_42 = arith.constant 5.95238118E-4 : f32
    %121 = vector.broadcast %cst_42 : f32 to vector<1x8xf32>
    %122 = arith.mulf %92, %121 : vector<1x8xf32>
    %cst_43 = arith.constant 7.93650805E-4 : f32
    %123 = vector.broadcast %cst_43 : f32 to vector<1x8xf32>
    %124 = arith.subf %123, %122 : vector<1x8xf32>
    %125 = arith.mulf %92, %124 : vector<1x8xf32>
    %cst_44 = arith.constant 0.00277777785 : f32
    %126 = vector.broadcast %cst_44 : f32 to vector<1x8xf32>
    %127 = arith.subf %126, %125 : vector<1x8xf32>
    %128 = arith.mulf %92, %127 : vector<1x8xf32>
    %cst_45 = arith.constant 0.0833333358 : f32
    %129 = vector.broadcast %cst_45 : f32 to vector<1x8xf32>
    %130 = arith.subf %129, %128 : vector<1x8xf32>
    %131 = arith.mulf %91, %130 : vector<1x8xf32>
    %132 = arith.addf %120, %131 : vector<1x8xf32>
    %133 = arith.subf %132, %104 : vector<1x8xf32>
    %cst_46 = arith.constant 5.000000e-01 : f32
    %134 = vector.broadcast %cst_46 : f32 to vector<1x8xf32>
    %135 = arith.mulf %134, %91 : vector<1x8xf32>
    %136 = arith.subf %89, %135 : vector<1x8xf32>
    %cst_47 = arith.constant 0.00416666688 : f32
    %137 = vector.broadcast %cst_47 : f32 to vector<1x8xf32>
    %138 = arith.mulf %92, %137 : vector<1x8xf32>
    %cst_48 = arith.constant 0.0039682542 : f32
    %139 = vector.broadcast %cst_48 : f32 to vector<1x8xf32>
    %140 = arith.subf %139, %138 : vector<1x8xf32>
    %141 = arith.mulf %92, %140 : vector<1x8xf32>
    %cst_49 = arith.constant 0.00833333377 : f32
    %142 = vector.broadcast %cst_49 : f32 to vector<1x8xf32>
    %143 = arith.subf %142, %141 : vector<1x8xf32>
    %144 = arith.mulf %92, %143 : vector<1x8xf32>
    %cst_50 = arith.constant 0.0833333358 : f32
    %145 = vector.broadcast %cst_50 : f32 to vector<1x8xf32>
    %146 = arith.subf %145, %144 : vector<1x8xf32>
    %147 = arith.mulf %92, %146 : vector<1x8xf32>
    %148 = arith.subf %136, %147 : vector<1x8xf32>
    %149 = arith.mulf %114, %103 : vector<1x8xf32>
    %150 = arith.subf %148, %149 : vector<1x8xf32>
    %cst_51 = arith.constant dense<0.000000e+00> : vector<8xf32>
    %151 = vector.multi_reduction <add>, %69, %cst_51 [0] : vector<10x8xf32> to vector<8xf32>
    %152 = vector.shape_cast %151 : vector<8xf32> to vector<1x8xf32>
    %153 = arith.subf %133, %152 : vector<1x8xf32>
    %cst_52 = arith.constant 12.8018274 : f32
    %154 = vector.broadcast %cst_52 : f32 to vector<1x8xf32>
    %155 = arith.subf %153, %154 : vector<1x8xf32>
    %cst_53 = arith.constant 1.000000e+00 : f32
    %156 = vector.broadcast %cst_53 : f32 to vector<10x8xf32>
    %157 = arith.subf %20, %156 : vector<10x8xf32>
    %158 = vector.broadcast %150 : vector<1x8xf32> to vector<10x8xf32>
    %159 = arith.subf %86, %158 : vector<10x8xf32>
    %160 = arith.mulf %157, %159 : vector<10x8xf32>
    %cst_54 = arith.constant dense<0.000000e+00> : vector<8xf32>
    %161 = vector.multi_reduction <add>, %160, %cst_54 [0] : vector<10x8xf32> to vector<8xf32>
    %162 = vector.shape_cast %161 : vector<8xf32> to vector<1x8xf32>
    %163 = arith.addf %155, %162 : vector<1x8xf32>
    %cst_55 = arith.constant 5.000000e-01 : f32
    %164 = vector.broadcast %cst_55 : f32 to vector<1x8xf32>
    %165 = arith.mulf %164, %163 : vector<1x8xf32>
    %166 = arith.addf %18, %165 : vector<1x8xf32>
    %cst_56 = arith.constant dense<0.000000e+00> : vector<1xf32>
    %167 = vector.multi_reduction <add>, %166, %cst_56 [1] : vector<1x8xf32> to vector<1xf32>
    %168 = vector.shape_cast %167 : vector<1xf32> to vector<1x1xf32>
    %169 = vector.shape_cast %168 : vector<1x1xf32> to vector<1x1xf32>
    %170 = vector.broadcast %169 : vector<1x1xf32> to vector<1x128xf32>
    %c0_57 = arith.constant 0 : index
    %c0_58 = arith.constant 0 : index
    %171 = vector.load %arg3[%c0_57, %c0_58] : memref<1x128xf32, #tpu.memory_space<vmem>>, vector<1x128xf32>
    tpu.vector_store %arg3[%c0_57, %c0_58], %170 {strides = array<i32>} : memref<1x128xf32, #tpu.memory_space<vmem>>, vector<1x128xf32>,
    return
  }
  func.func @transform_0(%arg0: i32) -> (i32, i32) {
    %c0_i32 = arith.constant 0 : i32
    %c0_i32_0 = arith.constant 0 : i32
    return %arg0, %c0_i32 : i32, i32
  }
  func.func @transform_1(%arg0: i32) -> (i32, i32) {
    %c0_i32 = arith.constant 0 : i32
    %c0_i32_0 = arith.constant 0 : i32
    return %c0_i32, %arg0 : i32, i32
  }
  func.func @transform_2(%arg0: i32) -> (i32, i32) {
    %c0_i32 = arith.constant 0 : i32
    %c0_i32_0 = arith.constant 0 : i32
    return %c0_i32, %arg0 : i32, i32
  }
}

</mosaic_0001>

<llo_original>
// kernel: tpu_custom_call.1
$region0: #{tpu_custom_call.1}
  #allocation0 [shape = 'u32[]', space=smem, size = 0x4, offset = 0x4, fixed_abs, tag = 'smem constant byte address 0x4 - core index']
  #allocation1 [shape = 'u32[72,128]{1,0:T(1,128)}', space=vmem, size = 0x9000, scoped, tag = 'internal scratch']
  %s0 = inlined_call_operand.hbm [shape: f32[8,10], index: 0, kind: input, shape index: {}]
  %s1 = inlined_call_operand.hbm [shape: s32[1,8], index: 1, kind: input, shape index: {}]
  %s2 = inlined_call_operand.hbm [shape: f32[1,128], index: 2, kind: output, shape index: {}]
  %s3 = sld [smem:[#allocation0]]
  $region26: #{tpu_custom_call.1} parent=0
    _
  %s5 = ssub.s32 1, %s3
  %s6 = scalar_select 0, %s5, %s3
  $region1: #{tpu_custom_call.1} parent=0
    #allocation2 [shape = 'u8[4096]{0}', space=vmem, size = 0x1000, scoped, tag = 'input window, operand 0, single buffered']
    #allocation3 [shape = 's32[1]{0}', space=sflag, size = 0x4, scoped, tag = 'scoped memory for tpu_custom_call.1']
    #allocation4 [shape = 's32[1]{0}', space=sflag, size = 0x4, scoped, tag = 'scoped memory for tpu_custom_call.1']
    #allocation5 [shape = 'u8[512]{0}', space=vmem, size = 0x400, scoped, tag = 'input window, operand 1, single buffered']
    #allocation6 [shape = 's32[1]{0}', space=sflag, size = 0x4, scoped, tag = 'scoped memory for tpu_custom_call.1']
    #allocation7 [shape = 'u8[512]{0}', space=vmem, size = 0x400, scoped, tag = 'output window, operand 0, single buffered']
    %7 = vsyncpa [#allocation3], 0
    %8 = vsyncpa [#allocation6], 0
    %9 = vsyncpa [#allocation4], 0
    // Predicated region
    $region2: #{tpu_custom_call.1} parent=1 // pred_check
      _
    $region3: #{tpu_custom_call.1} parent=1 // pred_check_branch
      %11 = sbr.rel (0) target = $region5
    $region4: #{tpu_custom_call.1} parent=1 // pred_region
      %13 = vsyncadd [#allocation3], 0
      %s15 = sshll.u32 %s0, 4
      %s16 = int_to_ptr.hbm [resolvable:$true] %s15
      %s17 = sshll.u32 [#allocation2], 4
      %s18 = int_to_ptr.vmem [resolvable:$true] %s17
      %20 = dma.hbm_to_vmem [thread:$0]  %s16, 128, %s18, [#allocation3]
    $region5: #{tpu_custom_call.1} parent=1 // pred_fallthru
      _
    // Predicated region
    $region6: #{tpu_custom_call.1} parent=1 // pred_check
      _
    $region7: #{tpu_custom_call.1} parent=1 // pred_check_branch
      %22 = sbr.rel (0) target = $region9
    $region8: #{tpu_custom_call.1} parent=1 // pred_region
      %24 = vsyncadd [#allocation6], 0
      %s26 = sshll.u32 %s1, 4
      %s27 = int_to_ptr.hbm [resolvable:$true] %s26
      %s28 = sshll.u32 [#allocation5], 4
      %s29 = int_to_ptr.vmem [resolvable:$true] %s28
      %31 = dma.hbm_to_vmem [thread:$0]  %s27, 16, %s29, [#allocation6]
    $region9: #{tpu_custom_call.1} parent=1 // pred_fallthru
      _
    // Predicated region
    $region10: #{tpu_custom_call.1} parent=1 // pred_check
      _
    $region11: #{tpu_custom_call.1} parent=1 // pred_check_branch
      %33 = sbr.rel (0) target = $region13
    $region12: #{tpu_custom_call.1} parent=1 // pred_region
      %35 = dma.done [#allocation3], 128
    $region13: #{tpu_custom_call.1} parent=1 // pred_fallthru
      _
    // Predicated region
    $region14: #{tpu_custom_call.1} parent=1 // pred_check
      _
    $region15: #{tpu_custom_call.1} parent=1 // pred_check_branch
      %37 = sbr.rel (0) target = $region17
    $region16: #{tpu_custom_call.1} parent=1 // pred_region
      %39 = dma.done [#allocation6], 16
    $region17: #{tpu_custom_call.1} parent=1 // pred_fallthru
      _
    %v40 = vld [vmem:[#allocation2] sm:$0xff]
    %41 = vxpose.xlu0.b32.start [1/16] %v40, 128
    %42 = vxpose.xlu0.b32.cont [2/16] 0.0, 128
    %43 = vxpose.xlu0.b32.cont [3/16] 0.0, 128
    %44 = vxpose.xlu0.b32.cont [4/16] 0.0, 128
    %45 = vxpose.xlu0.b32.cont [5/16] 0.0, 128
    %46 = vxpose.xlu0.b32.cont [6/16] 0.0, 128
    %47 = vxpose.xlu0.b32.cont [7/16] 0.0, 128
    %48 = vxpose.xlu0.b32.cont [8/16] 0.0, 128
    %49 = vxpose.xlu0.b32.cont [9/16] 0.0, 128
    %50 = vxpose.xlu0.b32.cont [10/16] 0.0, 128
    %51 = vxpose.xlu0.b32.cont [11/16] 0.0, 128
    %52 = vxpose.xlu0.b32.cont [12/16] 0.0, 128
    %53 = vxpose.xlu0.b32.cont [13/16] 0.0, 128
    %54 = vxpose.xlu0.b32.cont [14/16] 0.0, 128
    %55 = vxpose.xlu0.b32.cont [15/16] 0.0, 128
    %56 = vxpose.xlu0.b32.end [16/16] 0.0, 128
    %v57 = vpop.trf.xlu0
    %v58 = vpop.trf.xlu0
    %v59 = vpop.trf.xlu0
    %v60 = vpop.trf.xlu0
    %v61 = vpop.trf.xlu0
    %v62 = vpop.trf.xlu0
    %v63 = vpop.trf.xlu0
    %v64 = vpop.trf.xlu0
    %v65 = vpop.trf.xlu0
    %v66 = vpop.trf.xlu0
    %v67 = vpop.trf.xlu0
    %v68 = vpop.trf.xlu0
    %v69 = vpop.trf.xlu0
    %v70 = vpop.trf.xlu0
    %v71 = vpop.trf.xlu0
    %v72 = vpop.trf.xlu0
    %v73 = vld [vmem:[#allocation5] sm:$0x1]
    %v74 = vmax.f32 %v57, 0.0
    %v75 = vmax.f32 %v58, 0.0
    %v76 = vlaneseq
    %v77 = vshrl.u32 %v76, 7
    %v78 = vadd.s32 %v77, 8
    %v79 = vperm.slane %v73, 0
    %vm80 = vcmp.eq.s32.totalorder %v77, %v79
    %vm81 = vcmp.eq.s32.totalorder %v78, %v79
    %v82 = vadd.f32 %v74, 1.0
    %v83 = vadd.f32 %v75, 1.0
    %vm84 = vcmask 64512
    %v85 = vsel %vm84, %v82, 0.0
    %vm86 = vcmask 58368
    %v87 = vsel %vm86, %v83, 0.0
    %v88 = vadd.f32 %v85, %v87
    %v89 = vrot.slane %v88, 4
    %v90 = vadd.f32 %v88, %v89
    %v91 = vrot.slane %v90, 2
    %v92 = vadd.f32 %v90, %v91
    %v93 = vrot.slane %v92, 1
    %v94 = vadd.f32 %v92, %v93
    %v95 = vsel %vm80, %v82, 0.0
    %v96 = vsel %vm81, %v83, 0.0
    %v97 = vsel %vm84, %v95, 0.0
    %v98 = vsel %vm86, %v96, 0.0
    %v99 = vadd.f32 %v97, %v98
    %v100 = vrot.slane %v99, 4
    %v101 = vadd.f32 %v99, %v100
    %v102 = vrot.slane %v101, 2
    %v103 = vadd.f32 %v101, %v102
    %v104 = vrot.slane %v103, 1
    %v105 = vadd.f32 %v103, %v104
    %v106 = vlog2.pop %v94
    %v107 = vmul.f32 %v106, 0.6931472
    %v108 = vlog2.pop %v105
    %v109 = vmul.f32 %v108, 0.6931472
    %v110 = vsub.f32 %v107, %v109
    %v111 = vsel %vm80, 1.0, %v82
    %v112 = vsel %vm81, 1.0, %v83
    %v113 = vsel %vm84, %v111, 0.0
    %v114 = vsel %vm86, %v112, 0.0
    %v115 = vadd.f32 %v113, %v114
    %v116 = vrot.slane %v115, 4
    %v117 = vadd.f32 %v115, %v116
    %v118 = vrot.slane %v117, 2
    %v119 = vadd.f32 %v117, %v118
    %v120 = vrot.slane %v119, 1
    %v121 = vadd.f32 %v119, %v120
    %v122 = vadd.f32 %v111, 4.0
    %v123 = vadd.f32 %v112, 4.0
    %v124 = vlog2.pop %v122
    %v125 = vmul.f32 %v124, 0.6931472
    %v126 = vlog2.pop %v123
    %v127 = vmul.f32 %v126, 0.6931472
    %v128 = vrcp.pop %v122
    %v129 = vmul.f32 %v122, %v128
    %v130 = vsub.f32 1.0, %v129
    %v131 = vmul.f32 %v128, %v130
    %v132 = vadd.f32 %v128, %v131
    %vm133 = vweird.f32 %v122
    %vm134 = vweird.f32 %v128
    %vm135 = vmor %vm133, %vm134
    %v136 = vsel %vm135, %v128, %v132
    %v137 = vand.u32 2147483647, %v122
    %vm138 = vcmp.eq.f32.partialorder %v137, 8.507059e+37
    %v139 = vand.u32 %v122, 2147483648
    %v140 = vor.u32 1.1754944e-38, %v139
    %v141 = vsel %vm138, %v140, %v136
    %v142 = vmul.f32 1.0, %v141
    %v143 = vrcp.pop %v123
    %v144 = vmul.f32 %v123, %v143
    %v145 = vsub.f32 1.0, %v144
    %v146 = vmul.f32 %v143, %v145
    %v147 = vadd.f32 %v143, %v146
    %vm148 = vweird.f32 %v123
    %vm149 = vweird.f32 %v143
    %vm150 = vmor %vm148, %vm149
    %v151 = vsel %vm150, %v143, %v147
    %v152 = vand.u32 2147483647, %v123
    %vm153 = vcmp.eq.f32.partialorder %v152, 8.507059e+37
    %v154 = vand.u32 %v123, 2147483648
    %v155 = vor.u32 1.1754944e-38, %v154
    %v156 = vsel %vm153, %v155, %v151
    %v157 = vmul.f32 1.0, %v156
    %v158 = vmul.f32 %v142, %v142
    %v159 = vmul.f32 %v157, %v157
    %v160 = vadd.f32 %v111, 1.0
    %v161 = vadd.f32 %v112, 1.0
    %v162 = vmul.f32 %v111, %v160
    %v163 = vmul.f32 %v112, %v161
    %v164 = vadd.f32 %v111, 2.0
    %v165 = vadd.f32 %v112, 2.0
    %v166 = vmul.f32 %v162, %v164
    %v167 = vmul.f32 %v163, %v165
    %v168 = vadd.f32 %v111, 3.0
    %v169 = vadd.f32 %v112, 3.0
    %v170 = vmul.f32 %v166, %v168
    %v171 = vmul.f32 %v167, %v169
    %v172 = vrcp.pop %v170
    %v173 = vmul.f32 %v170, %v172
    %v174 = vsub.f32 1.0, %v173
    %v175 = vmul.f32 %v172, %v174
    %v176 = vadd.f32 %v172, %v175
    %vm177 = vweird.f32 %v170
    %vm178 = vweird.f32 %v172
    %vm179 = vmor %vm177, %vm178
    %v180 = vsel %vm179, %v172, %v176
    %v181 = vand.u32 2147483647, %v170
    %vm182 = vcmp.eq.f32.partialorder %v181, 8.507059e+37
    %v183 = vand.u32 %v170, 2147483648
    %v184 = vor.u32 1.1754944e-38, %v183
    %v185 = vsel %vm182, %v184, %v180
    %v186 = vmul.f32 1.0, %v185
    %v187 = vrcp.pop %v171
    %v188 = vmul.f32 %v171, %v187
    %v189 = vsub.f32 1.0, %v188
    %v190 = vmul.f32 %v187, %v189
    %v191 = vadd.f32 %v187, %v190
    %vm192 = vweird.f32 %v171
    %vm193 = vweird.f32 %v187
    %vm194 = vmor %vm192, %vm193
    %v195 = vsel %vm194, %v187, %v191
    %v196 = vand.u32 2147483647, %v171
    %vm197 = vcmp.eq.f32.partialorder %v196, 8.507059e+37
    %v198 = vand.u32 %v171, 2147483648
    %v199 = vor.u32 1.1754944e-38, %v198
    %v200 = vsel %vm197, %v199, %v195
    %v201 = vmul.f32 1.0, %v200
    %v202 = vlog2.pop %v170
    %v203 = vmul.f32 %v202, 0.6931472
    %v204 = vlog2.pop %v171
    %v205 = vmul.f32 %v204, 0.6931472
    %v206 = vmul.f32 %v111, 4.0
    %v207 = vmul.f32 %v112, 4.0
    %v208 = vadd.f32 %v206, 18.0
    %v209 = vadd.f32 %v207, 18.0
    %v210 = vmul.f32 %v208, %v111
    %v211 = vmul.f32 %v209, %v112
    %v212 = vadd.f32 %v210, 22.0
    %v213 = vadd.f32 %v211, 22.0
    %v214 = vmul.f32 %v212, %v111
    %v215 = vmul.f32 %v213, %v112
    %v216 = vadd.f32 %v214, 6.0
    %v217 = vadd.f32 %v215, 6.0
    %v218 = vsub.f32 %v122, 0.5
    %v219 = vsub.f32 %v123, 0.5
    %v220 = vmul.f32 %v218, %v125
    %v221 = vmul.f32 %v219, %v127
    %v222 = vsub.f32 %v220, %v122
    %v223 = vsub.f32 %v221, %v123
    %v224 = vadd.f32 %v222, 0.9189385
    %v225 = vadd.f32 %v223, 0.9189385
    %v226 = vmul.f32 %v158, 0.0005952381
    %v227 = vmul.f32 %v159, 0.0005952381
    %v228 = vsub.f32 0.0007936508, %v226
    %v229 = vsub.f32 0.0007936508, %v227
    %v230 = vmul.f32 %v158, %v228
    %v231 = vmul.f32 %v159, %v229
    %v232 = vsub.f32 0.0027777778, %v230
    %v233 = vsub.f32 0.0027777778, %v231
    %v234 = vmul.f32 %v158, %v232
    %v235 = vmul.f32 %v159, %v233
    %v236 = vsub.f32 0.083333336, %v234
    %v237 = vsub.f32 0.083333336, %v235
    %v238 = vmul.f32 %v142, %v236
    %v239 = vmul.f32 %v157, %v237
    %v240 = vadd.f32 %v224, %v238
    %v241 = vadd.f32 %v225, %v239
    %v242 = vsub.f32 %v240, %v203
    %v243 = vsub.f32 %v241, %v205
    %v244 = vmul.f32 %v142, 0.5
    %v245 = vmul.f32 %v157, 0.5
    %v246 = vsub.f32 %v125, %v244
    %v247 = vsub.f32 %v127, %v245
    %v248 = vmul.f32 %v158, 0.004166667
    %v249 = vmul.f32 %v159, 0.004166667
    %v250 = vsub.f32 0.003968254, %v248
    %v251 = vsub.f32 0.003968254, %v249
    %v252 = vmul.f32 %v158, %v250
    %v253 = vmul.f32 %v159, %v251
    %v254 = vsub.f32 0.008333334, %v252
    %v255 = vsub.f32 0.008333334, %v253
    %v256 = vmul.f32 %v158, %v254
    %v257 = vmul.f32 %v159, %v255
    %v258 = vsub.f32 0.083333336, %v256
    %v259 = vsub.f32 0.083333336, %v257
    %v260 = vmul.f32 %v158, %v258
    %v261 = vmul.f32 %v159, %v259
    %v262 = vsub.f32 %v246, %v260
    %v263 = vsub.f32 %v247, %v261
    %v264 = vmul.f32 %v216, %v186
    %v265 = vmul.f32 %v217, %v201
    %v266 = vsub.f32 %v262, %v264
    %v267 = vsub.f32 %v263, %v265
    %v268 = vadd.f32 %v121, 4.0
    %v269 = vlog2.pop %v268
    %v270 = vmul.f32 %v269, 0.6931472
    %v271 = vrcp.pop %v268
    %v272 = vmul.f32 %v268, %v271
    %v273 = vsub.f32 1.0, %v272
    %v274 = vmul.f32 %v271, %v273
    %v275 = vadd.f32 %v271, %v274
    %vm276 = vweird.f32 %v268
    %vm277 = vweird.f32 %v271
    %vm278 = vmor %vm276, %vm277
    %v279 = vsel %vm278, %v271, %v275
    %v280 = vand.u32 2147483647, %v268
    %vm281 = vcmp.eq.f32.partialorder %v280, 8.507059e+37
    %v282 = vand.u32 %v268, 2147483648
    %v283 = vor.u32 1.1754944e-38, %v282
    %v284 = vsel %vm281, %v283, %v279
    %v285 = vmul.f32 1.0, %v284
    %v286 = vmul.f32 %v285, %v285
    %v287 = vadd.f32 %v121, 1.0
    %v288 = vmul.f32 %v121, %v287
    %v289 = vadd.f32 %v121, 2.0
    %v290 = vmul.f32 %v288, %v289
    %v291 = vadd.f32 %v121, 3.0
    %v292 = vmul.f32 %v290, %v291
    %v293 = vrcp.pop %v292
    %v294 = vmul.f32 %v292, %v293
    %v295 = vsub.f32 1.0, %v294
    %v296 = vmul.f32 %v293, %v295
    %v297 = vadd.f32 %v293, %v296
    %vm298 = vweird.f32 %v292
    %vm299 = vweird.f32 %v293
    %vm300 = vmor %vm298, %vm299
    %v301 = vsel %vm300, %v293, %v297
    %v302 = vand.u32 2147483647, %v292
    %vm303 = vcmp.eq.f32.partialorder %v302, 8.507059e+37
    %v304 = vand.u32 %v292, 2147483648
    %v305 = vor.u32 1.1754944e-38, %v304
    %v306 = vsel %vm303, %v305, %v301
    %v307 = vmul.f32 1.0, %v306
    %v308 = vlog2.pop %v292
    %v309 = vmul.f32 %v308, 0.6931472
    %v310 = vmul.f32 %v121, 4.0
    %v311 = vadd.f32 %v310, 18.0
    %v312 = vmul.f32 %v311, %v121
    %v313 = vadd.f32 %v312, 22.0
    %v314 = vmul.f32 %v313, %v121
    %v315 = vadd.f32 %v314, 6.0
    %v316 = vsub.f32 %v268, 0.5
    %v317 = vmul.f32 %v316, %v270
    %v318 = vsub.f32 %v317, %v268
    %v319 = vadd.f32 %v318, 0.9189385
    %v320 = vmul.f32 %v286, 0.0005952381
    %v321 = vsub.f32 0.0007936508, %v320
    %v322 = vmul.f32 %v286, %v321
    %v323 = vsub.f32 0.0027777778, %v322
    %v324 = vmul.f32 %v286, %v323
    %v325 = vsub.f32 0.083333336, %v324
    %v326 = vmul.f32 %v285, %v325
    %v327 = vadd.f32 %v319, %v326
    %v328 = vsub.f32 %v327, %v309
    %v329 = vmul.f32 %v285, 0.5
    %v330 = vsub.f32 %v270, %v329
    %v331 = vmul.f32 %v286, 0.004166667
    %v332 = vsub.f32 0.003968254, %v331
    %v333 = vmul.f32 %v286, %v332
    %v334 = vsub.f32 0.008333334, %v333
    %v335 = vmul.f32 %v286, %v334
    %v336 = vsub.f32 0.083333336, %v335
    %v337 = vmul.f32 %v286, %v336
    %v338 = vsub.f32 %v330, %v337
    %v339 = vmul.f32 %v315, %v307
    %v340 = vsub.f32 %v338, %v339
    %v341 = vsel %vm84, %v242, 0.0
    %v342 = vsel %vm86, %v243, 0.0
    %v343 = vadd.f32 %v341, %v342
    %v344 = vrot.slane %v343, 4
    %v345 = vadd.f32 %v343, %v344
    %v346 = vrot.slane %v345, 2
    %v347 = vadd.f32 %v345, %v346
    %v348 = vrot.slane %v347, 1
    %v349 = vadd.f32 %v347, %v348
    %v350 = vsub.f32 %v328, %v349
    %v351 = vsub.f32 %v350, 12.801827
    %v352 = vsub.f32 %v111, 1.0
    %v353 = vsub.f32 %v112, 1.0
    %v354 = vsub.f32 %v266, %v340
    %v355 = vsub.f32 %v267, %v340
    %v356 = vmul.f32 %v352, %v354
    %v357 = vmul.f32 %v353, %v355
    %v358 = vsel %vm84, %v356, 0.0
    %v359 = vsel %vm86, %v357, 0.0
    %v360 = vadd.f32 %v358, %v359
    %v361 = vrot.slane %v360, 4
    %v362 = vadd.f32 %v360, %v361
    %v363 = vrot.slane %v362, 2
    %v364 = vadd.f32 %v362, %v363
    %v365 = vrot.slane %v364, 1
    %v366 = vadd.f32 %v364, %v365
    %v367 = vadd.f32 %v351, %v366
    %v368 = vmul.f32 %v367, 0.5
    %v369 = vadd.f32 %v110, %v368
    %v370 = vsel %vm84, %v369, 0.0
    %371 = vadd.xlane.f32.xlu0 %v370
    %v372 = vpop.xlane.xlu0 %371
    %373 = vst [vmem:[#allocation7] sm:$0x1] %v372
    // Predicated region
    $region18: #{tpu_custom_call.1} parent=1 // pred_check
      _
    $region19: #{tpu_custom_call.1} parent=1 // pred_check_branch
      %375 = sbr.rel (0) target = $region21
    $region20: #{tpu_custom_call.1} parent=1 // pred_region
      %377 = vsyncadd [#allocation4], 0
      %s379 = sshll.u32 [#allocation7], 4
      %s380 = int_to_ptr.vmem [resolvable:$true] %s379
      %s381 = sshll.u32 %s2, 4
      %s382 = int_to_ptr.hbm [resolvable:$true] %s381
      %384 = dma.vmem_to_hbm [thread:$0]  %s380, 16, %s382, [#allocation4]
    $region21: #{tpu_custom_call.1} parent=1 // pred_fallthru
      _
    // Predicated region
    $region22: #{tpu_custom_call.1} parent=1 // pred_check
      _
    $region23: #{tpu_custom_call.1} parent=1 // pred_check_branch
      %386 = sbr.rel (0) target = $region25
    $region24: #{tpu_custom_call.1} parent=1 // pred_region
      %388 = dma.done [#allocation4], 16
    $region25: #{tpu_custom_call.1} parent=1 // pred_fallthru
      _
    %389 = vsyncpa [#allocation3], 1
    %390 = vsyncpa [#allocation6], 1
    %391 = vsyncpa [#allocation4], 1

</llo_original>
